<compile_context>
chip_gen: v6e
topology: v6e:2x2x1
jax: 0.10.0
libtpu: 0.0.40
codegen_flags: <defaults>
</compile_context>

<pallas_src>
import jax
import jax.numpy as jnp
from jax.experimental import pallas as pl
from jax.experimental.pallas import tpu as pltpu


def se_layer_kernel(x_ref, w1_ref, w2_ref, o_ref):
    x = x_ref[...]                                       # (TM, Cf) f32, lane-dense

    # Stage 1: x @ W1_fold.T on the MXU, bf16 operands, f32 accumulate.
    # dot_general contracts both last (lane) dims -> no transpose materialized.
    h = jax.lax.dot_general(
        x.astype(jnp.bfloat16), w1_ref[...],
        dimension_numbers=(((1,), (1,)), ((), ())),
        preferred_element_type=jnp.float32)              # (TM, Hf) f32
    h = jnp.maximum(h, 0.0)                              # ReLU (f32, VPU)

    # Stage 2: Hf is tiny (8 after folding) -> unrolled broadcast FMAs on the
    # VPU instead of a second, badly underfilled MXU pass.
    w2 = w2_ref[...]                                     # (Hf, Cf) f32
    num_h = w2.shape[0]
    y = h[:, 0:1] * w2[0, :]
    for k in range(1, num_h):                            # static unroll
        y = y + h[:, k:k + 1] * w2[k, :]

    # Sigmoid on the EUP: exp + approximate reciprocal (VALU stays free).
    y = pl.reciprocal(1.0 + jnp.exp(-y), approx=True)

    o_ref[...] = (x * y).astype(o_ref.dtype)             # gate in f32, full-lane store


def prepare_se_weights(w1, w2, fold=None):
    """One-time weight prep — call OUTSIDE the hot path (weights are constants).

    w1 : (H, C) torch layout of Linear(C, C//r)  (out_features, in_features)
    w2 : (C, H) torch layout of Linear(C//r, C)

    Builds 128-lane-dense block-diagonal folded weights so `fold` consecutive
    input rows are processed as one lane-dense row (C=64 -> fold=2 -> 128).
    Returns (W1_fold bf16 (fold*H, fold*C), W2_fold f32 (fold*H, fold*C)).
    """
    H, C = w1.shape
    if fold is None:
        fold = 128 // C if (C < 128 and 128 % C == 0) else 1
    w1 = jnp.asarray(w1, jnp.float32)
    w2t = jnp.asarray(w2, jnp.float32).T                 # (H, C), rows lane-dense
    if fold > 1:
        hf, cf = fold * H, fold * C
        w1f = jnp.zeros((hf, cf), jnp.float32)
        w2f = jnp.zeros((hf, cf), jnp.float32)
        for j in range(fold):                            # one-time, tiny
            w1f = w1f.at[j * H:(j + 1) * H, j * C:(j + 1) * C].set(w1)
            w2f = w2f.at[j * H:(j + 1) * H, j * C:(j + 1) * C].set(w2t)
    else:
        w1f, w2f = w1, w2t
    return w1f.astype(jnp.bfloat16), w2f


def _pick_row_tile(rows, target):
    """Big tiles (amortize per-step overhead) but keep >=2 grid steps so the
    parallel axis can still shard across v7x's two TensorCores."""
    if rows <= 16:
        return rows                                      # single full block
    t = min(target, rows)
    t -= t % 8                                           # sublane multiple of 8
    if pl.cdiv(rows, t) < 2:
        t = ((rows + 1) // 2 + 7) // 8 * 8               # ~half, rounded up to 8
    return max(8, min(t, rows))


def se_layer(x, w1f, w2f, *, target_rows=2048):
    """x: (B, C) f32; (w1f, w2f) from prepare_se_weights()."""
    B, C = x.shape
    Hf, Cf = w1f.shape
    assert w2f.shape == (Hf, Cf) and Cf % C == 0
    fold = Cf // C

    # Cold-path fallback only when B is not a multiple of the fold factor
    # (rare); the common even-B path does zero extra HBM copies.
    pad = (-B) % fold
    if pad:
        x = jnp.concatenate([x, jnp.zeros((pad, C), x.dtype)], axis=0)
    rows = (B + pad) // fold
    x_fold = x.reshape(rows, Cf)                         # contiguous -> free bitcast

    tm = _pick_row_tile(rows, target_rows)
    grid = (pl.cdiv(rows, tm),)                          # ragged last block is OK:
                                                         # OOB writes are dropped.
    out = pl.pallas_call(
        se_layer_kernel,
        out_shape=jax.ShapeDtypeStruct((rows, Cf), x.dtype),
        grid=grid,
        in_specs=[
            pl.BlockSpec((tm, Cf), lambda i: (i, 0)),    # x: pipelined row tiles
            pl.BlockSpec((Hf, Cf), lambda i: (0, 0)),    # W1 fold (bf16): resident
            pl.BlockSpec((Hf, Cf), lambda i: (0, 0)),    # W2 fold (f32): resident
        ],
        out_specs=pl.BlockSpec((tm, Cf), lambda i: (i, 0)),
        compiler_params=pltpu.CompilerParams(
            dimension_semantics=("parallel",)),
    )(x_fold, w1f, w2f)

    out = out.reshape(rows * fold, C)                    # free bitcast back
    return out[:B] if pad else out


def se_layer_reference(x, w1, w2):
    """Pure-JAX f32 reference mirroring the PyTorch module."""
    h = jax.nn.relu(x @ w1.T)
    y = jax.nn.sigmoid(h @ w2.T)
    return x * y


if __name__ == "__main__":
    # Module-consistent small shapes: channel=64, reduction=16 -> hidden=4.
    B, C, R = 256, 64, 16
    H = C // R

    key = jax.random.PRNGKey(0)
    kx, k1, k2 = jax.random.split(key, 3)

    x = jax.random.normal(kx, (B, C), dtype=jnp.float32)
    # torch nn.Linear weight layout: (out_features, in_features).
    bound1 = 1.0 / (C ** 0.5)
    bound2 = 1.0 / (H ** 0.5)
    w1 = jax.random.uniform(k1, (H, C), jnp.float32, -bound1, bound1)  # Linear(C, C//r)
    w2 = jax.random.uniform(k2, (C, H), jnp.float32, -bound2, bound2)  # Linear(C//r, C)

    # One-time prep outside the per-call hot path.
    w1f, w2f = prepare_se_weights(w1, w2)

    run = jax.jit(se_layer)
    out = jax.block_until_ready(run(x, w1f, w2f))

    ref = se_layer_reference(x, w1, w2)
    assert out.shape == (B, C)
    # bf16 stage-1 operands + approx EUP reciprocal -> small bounded deviation
    # from the pure-f32 reference.
    err = float(jnp.max(jnp.abs(out - ref)))
    assert jnp.allclose(out, ref, atol=2e-2, rtol=2e-2), (
        f"mismatch vs reference: max abs err = {err:.3e}")

    print("KERNEL_OK")
</pallas_src>

<mosaic_0001>
module attributes {stable_mosaic.version = 11 : i64} {
  func.func @se_layer_kernel(%arg0: i32, %arg1: memref<64x128xf32, #tpu.memory_space<vmem>>, %arg2: memref<8x128xbf16, #tpu.memory_space<vmem>>, %arg3: memref<8x128xf32, #tpu.memory_space<vmem>>, %arg4: memref<64x128xf32, #tpu.memory_space<vmem>>) attributes {dimension_semantics = [#tpu.dimension_semantics<parallel>], iteration_bounds = array<i64: 2>, scalar_prefetch = 0 : i64, scratch_operands = 0 : i64, tpu.core_type = #tpu.core_type<tc>, window_params = [{transform_indices = @transform_0, window_bounds = array<i64: 64, 128>}, {pipeline_mode = #tpu.pipeline_mode<synchronous>, transform_indices = @transform_1, window_bounds = array<i64: 8, 128>}, {pipeline_mode = #tpu.pipeline_mode<synchronous>, transform_indices = @transform_2, window_bounds = array<i64: 8, 128>}, {transform_indices = @transform_3, window_bounds = array<i64: 64, 128>}]} {
    %c0 = arith.constant 0 : index
    %c0_0 = arith.constant 0 : index
    %0 = vector.load %arg1[%c0, %c0_0] : memref<64x128xf32, #tpu.memory_space<vmem>>, vector<64x128xf32>
    %1 = arith.truncf %0 : vector<64x128xf32> to vector<64x128xbf16>
    %c0_1 = arith.constant 0 : index
    %c0_2 = arith.constant 0 : index
    %2 = vector.load %arg2[%c0_1, %c0_2] : memref<8x128xbf16, #tpu.memory_space<vmem>>, vector<8x128xbf16>
    %cst = arith.constant dense<0.000000e+00> : vector<64x8xf32>
    %3 = tpu.matmul %1, %2, %cst {dimension_numbers = #tpu.dot_dimension_numbers<[1], [1], [0], [0], [0, 0, 1, 0], [], []>} : vector<64x128xbf16>, vector<8x128xbf16>, vector<64x8xf32> -> vector<64x8xf32>
    %cst_3 = arith.constant 0.000000e+00 : f32
    %4 = vector.broadcast %cst_3 : f32 to vector<64x8xf32>
    %5 = arith.maximumf %3, %4 : vector<64x8xf32>
    %c0_4 = arith.constant 0 : index
    %c0_5 = arith.constant 0 : index
    %6 = vector.load %arg3[%c0_4, %c0_5] : memref<8x128xf32, #tpu.memory_space<vmem>>, vector<8x128xf32>
    %7 = vector.extract_strided_slice %5 {offsets = [0, 0], sizes = [64, 1], strides = [1, 1]} : vector<64x8xf32> to vector<64x1xf32>
    %8 = vector.extract_strided_slice %6 {offsets = [0, 0], sizes = [1, 128], strides = [1, 1]} : vector<8x128xf32> to vector<1x128xf32>
    %9 = vector.shape_cast %8 : vector<1x128xf32> to vector<128xf32>
    %10 = vector.shape_cast %9 : vector<128xf32> to vector<1x128xf32>
    %11 = vector.broadcast %7 : vector<64x1xf32> to vector<64x128xf32>
    %12 = vector.broadcast %10 : vector<1x128xf32> to vector<64x128xf32>
    %13 = arith.mulf %11, %12 : vector<64x128xf32>
    %14 = vector.extract_strided_slice %5 {offsets = [0, 1], sizes = [64, 1], strides = [1, 1]} : vector<64x8xf32> to vector<64x1xf32>
    %15 = vector.extract_strided_slice %6 {offsets = [1, 0], sizes = [1, 128], strides = [1, 1]} : vector<8x128xf32> to vector<1x128xf32>
    %16 = vector.shape_cast %15 : vector<1x128xf32> to vector<128xf32>
    %17 = vector.shape_cast %16 : vector<128xf32> to vector<1x128xf32>
    %18 = vector.broadcast %14 : vector<64x1xf32> to vector<64x128xf32>
    %19 = vector.broadcast %17 : vector<1x128xf32> to vector<64x128xf32>
    %20 = arith.mulf %18, %19 : vector<64x128xf32>
    %21 = arith.addf %13, %20 : vector<64x128xf32>
    %22 = vector.extract_strided_slice %5 {offsets = [0, 2], sizes = [64, 1], strides = [1, 1]} : vector<64x8xf32> to vector<64x1xf32>
    %23 = vector.extract_strided_slice %6 {offsets = [2, 0], sizes = [1, 128], strides = [1, 1]} : vector<8x128xf32> to vector<1x128xf32>
    %24 = vector.shape_cast %23 : vector<1x128xf32> to vector<128xf32>
    %25 = vector.shape_cast %24 : vector<128xf32> to vector<1x128xf32>
    %26 = vector.broadcast %22 : vector<64x1xf32> to vector<64x128xf32>
    %27 = vector.broadcast %25 : vector<1x128xf32> to vector<64x128xf32>
    %28 = arith.mulf %26, %27 : vector<64x128xf32>
    %29 = arith.addf %21, %28 : vector<64x128xf32>
    %30 = vector.extract_strided_slice %5 {offsets = [0, 3], sizes = [64, 1], strides = [1, 1]} : vector<64x8xf32> to vector<64x1xf32>
    %31 = vector.extract_strided_slice %6 {offsets = [3, 0], sizes = [1, 128], strides = [1, 1]} : vector<8x128xf32> to vector<1x128xf32>
    %32 = vector.shape_cast %31 : vector<1x128xf32> to vector<128xf32>
    %33 = vector.shape_cast %32 : vector<128xf32> to vector<1x128xf32>
    %34 = vector.broadcast %30 : vector<64x1xf32> to vector<64x128xf32>
    %35 = vector.broadcast %33 : vector<1x128xf32> to vector<64x128xf32>
    %36 = arith.mulf %34, %35 : vector<64x128xf32>
    %37 = arith.addf %29, %36 : vector<64x128xf32>
    %38 = vector.extract_strided_slice %5 {offsets = [0, 4], sizes = [64, 1], strides = [1, 1]} : vector<64x8xf32> to vector<64x1xf32>
    %39 = vector.extract_strided_slice %6 {offsets = [4, 0], sizes = [1, 128], strides = [1, 1]} : vector<8x128xf32> to vector<1x128xf32>
    %40 = vector.shape_cast %39 : vector<1x128xf32> to vector<128xf32>
    %41 = vector.shape_cast %40 : vector<128xf32> to vector<1x128xf32>
    %42 = vector.broadcast %38 : vector<64x1xf32> to vector<64x128xf32>
    %43 = vector.broadcast %41 : vector<1x128xf32> to vector<64x128xf32>
    %44 = arith.mulf %42, %43 : vector<64x128xf32>
    %45 = arith.addf %37, %44 : vector<64x128xf32>
    %46 = vector.extract_strided_slice %5 {offsets = [0, 5], sizes = [64, 1], strides = [1, 1]} : vector<64x8xf32> to vector<64x1xf32>
    %47 = vector.extract_strided_slice %6 {offsets = [5, 0], sizes = [1, 128], strides = [1, 1]} : vector<8x128xf32> to vector<1x128xf32>
    %48 = vector.shape_cast %47 : vector<1x128xf32> to vector<128xf32>
    %49 = vector.shape_cast %48 : vector<128xf32> to vector<1x128xf32>
    %50 = vector.broadcast %46 : vector<64x1xf32> to vector<64x128xf32>
    %51 = vector.broadcast %49 : vector<1x128xf32> to vector<64x128xf32>
    %52 = arith.mulf %50, %51 : vector<64x128xf32>
    %53 = arith.addf %45, %52 : vector<64x128xf32>
    %54 = vector.extract_strided_slice %5 {offsets = [0, 6], sizes = [64, 1], strides = [1, 1]} : vector<64x8xf32> to vector<64x1xf32>
    %55 = vector.extract_strided_slice %6 {offsets = [6, 0], sizes = [1, 128], strides = [1, 1]} : vector<8x128xf32> to vector<1x128xf32>
    %56 = vector.shape_cast %55 : vector<1x128xf32> to vector<128xf32>
    %57 = vector.shape_cast %56 : vector<128xf32> to vector<1x128xf32>
    %58 = vector.broadcast %54 : vector<64x1xf32> to vector<64x128xf32>
    %59 = vector.broadcast %57 : vector<1x128xf32> to vector<64x128xf32>
    %60 = arith.mulf %58, %59 : vector<64x128xf32>
    %61 = arith.addf %53, %60 : vector<64x128xf32>
    %62 = vector.extract_strided_slice %5 {offsets = [0, 7], sizes = [64, 1], strides = [1, 1]} : vector<64x8xf32> to vector<64x1xf32>
    %63 = vector.extract_strided_slice %6 {offsets = [7, 0], sizes = [1, 128], strides = [1, 1]} : vector<8x128xf32> to vector<1x128xf32>
    %64 = vector.shape_cast %63 : vector<1x128xf32> to vector<128xf32>
    %65 = vector.shape_cast %64 : vector<128xf32> to vector<1x128xf32>
    %66 = vector.broadcast %62 : vector<64x1xf32> to vector<64x128xf32>
    %67 = vector.broadcast %65 : vector<1x128xf32> to vector<64x128xf32>
    %68 = arith.mulf %66, %67 : vector<64x128xf32>
    %69 = arith.addf %61, %68 : vector<64x128xf32>
    %cst_6 = arith.constant 0.000000e+00 : f32
    %70 = vector.broadcast %cst_6 : f32 to vector<64x128xf32>
    %71 = arith.subf %70, %69 : vector<64x128xf32>
    %72 = math.exp %71 : vector<64x128xf32>
    %cst_7 = arith.constant 1.000000e+00 : f32
    %73 = vector.broadcast %cst_7 : f32 to vector<64x128xf32>
    %74 = arith.addf %73, %72 : vector<64x128xf32>
    %75 = tpu.reciprocal %74 {approx = true} : vector<64x128xf32> -> vector<64x128xf32>
    %76 = arith.mulf %0, %75 : vector<64x128xf32>
    %c0_8 = arith.constant 0 : index
    %c0_9 = arith.constant 0 : index
    %77 = vector.load %arg4[%c0_8, %c0_9] : memref<64x128xf32, #tpu.memory_space<vmem>>, vector<64x128xf32>
    tpu.vector_store %arg4[%c0_8, %c0_9], %76 {strides = array<i32>} : memref<64x128xf32, #tpu.memory_space<vmem>>, vector<64x128xf32>,
    return
  }
  func.func @transform_0(%arg0: i32) -> (i32, i32) {
    %c0_i32 = arith.constant 0 : i32
    %c0_i32_0 = arith.constant 0 : i32
    return %arg0, %c0_i32 : i32, i32
  }
  func.func @transform_1(%arg0: i32) -> (i32, i32) {
    %c0_i32 = arith.constant 0 : i32
    %c0_i32_0 = arith.constant 0 : i32
    %c0_i32_1 = arith.constant 0 : i32
    return %c0_i32, %c0_i32_0 : i32, i32
  }
  func.func @transform_2(%arg0: i32) -> (i32, i32) {
    %c0_i32 = arith.constant 0 : i32
    %c0_i32_0 = arith.constant 0 : i32
    %c0_i32_1 = arith.constant 0 : i32
    return %c0_i32, %c0_i32_0 : i32, i32
  }
  func.func @transform_3(%arg0: i32) -> (i32, i32) {
    %c0_i32 = arith.constant 0 : i32
    %c0_i32_0 = arith.constant 0 : i32
    return %arg0, %c0_i32 : i32, i32
  }
}

</mosaic_0001>

<llo_original>
// kernel: se_layer.1
$region0: #{se_layer.1}
  #allocation0 [shape = 'u32[]', space=smem, size = 0x4, offset = 0x4, fixed_abs, tag = 'smem constant byte address 0x4 - core index']
  #allocation1 [shape = 'u32[144,128]{1,0:T(1,128)}', space=vmem, size = 0x12000, scoped, tag = 'internal scratch']
  %s0 = inlined_call_operand.vmem [shape: f32[128,128], index: 0, kind: input, shape index: {}]
  %s1 = inlined_call_operand.vmem [shape: bf16[8,128], index: 1, kind: input, shape index: {}]
  %s2 = inlined_call_operand.vmem [shape: f32[8,128], index: 2, kind: input, shape index: {}]
  %s3 = inlined_call_operand.vmem [shape: f32[128,128], index: 3, kind: output, shape index: {}]
  %s4 = sld [smem:[#allocation0]]
  $region45: #{se_layer.1} parent=0
    _
  %s6 = ssub.s32 1, %s4
  %s7 = scalar_select 0, %s6, %s4
  loop: start=0, step=1, limit=4
  $region2: #{se_layer.1} parent=0 // loop_pre_header
    _
  $region3: #{se_layer.1} parent=0 // loop_header
    %s9 = sphi 0, %s13
    %p10 = scmp.ge.s32.totalorder %s9, 4
    %s19 = sphi 0, %s21
    %s22 = sphi 0, %s19
    %s23 = sphi 0, %s22
    %s39 = sphi 0, %s23
    %s43 = sphi 0, %s43
    %s45 = sphi 0, %s43
    %s46 = sphi 0, %s45
    %s60 = sphi 0, %s46
    %s64 = sphi 0, %s64
    %s66 = sphi 0, %s64
    %s67 = sphi 0, %s66
    %s81 = sphi 0, %s67
    %s87 = sphi 0, %s89
    %s90 = sphi 0, %s87
    %s91 = sphi 0, %s90
    %s107 = sphi 0, %s91
  $region4: #{se_layer.1} parent=0 // loop_header_branch
    %12 = sbr.rel (%p10) target = $region8
  $region5: #{se_layer.1} parent=0 // loop_body
    %s14 = ssub.s32 %s9, 1
    %s15 = ssub.s32 %s9, 2
    %s16 = sadd.s32 %s9, 1
    %s17 = ssub.s32 %s9, %s16
    %p18 = scmp.eq.s32.totalorder %s17, 0
    %s20 = sadd.s32 %s19, 1
    %s21 = scalar_select %p18, %s19, %s20
    %p24 = pneg %p18
    %p25 = scmp.eq.s32.totalorder %s9, 1
    %p26 = por %p24, %p25
    %p27 = scmp.ne.s32.totalorder %s19, %s22
    %p28 = scmp.eq.s32.totalorder %s9, 0
    %p29 = por %p27, %p28
    %p30 = scmp.ne.s32.totalorder %s19, %s22
    %p31 = scmp.eq.s32.totalorder %s14, 1
    %p32 = por %p30, %p31
    %p33 = scmp.ne.s32.totalorder %s22, %s23
    %p34 = scmp.eq.s32.totalorder %s14, 0
    %p35 = por %p33, %p34
    %p36 = scmp.ne.s32.totalorder %s22, %s23
    %p37 = scmp.eq.s32.totalorder %s15, 1
    %p38 = por %p36, %p37
    %p40 = scmp.ne.s32.totalorder %s23, %s39
    %p41 = scmp.eq.s32.totalorder %s15, 0
    %p42 = por %p40, %p41
    %s44 = sadd.s32 %s43, 1
    %p47 = scmp.eq.s32.totalorder %s9, 1
    %p48 = scmp.ne.s32.totalorder %s43, %s45
    %p49 = scmp.eq.s32.totalorder %s9, 0
    %p50 = por %p48, %p49
    %p51 = scmp.ne.s32.totalorder %s43, %s45
    %p52 = scmp.eq.s32.totalorder %s14, 1
    %p53 = por %p51, %p52
    %p54 = scmp.ne.s32.totalorder %s45, %s46
    %p55 = scmp.eq.s32.totalorder %s14, 0
    %p56 = por %p54, %p55
    %p57 = scmp.ne.s32.totalorder %s45, %s46
    %p58 = scmp.eq.s32.totalorder %s15, 1
    %p59 = por %p57, %p58
    %p61 = scmp.ne.s32.totalorder %s46, %s60
    %p62 = scmp.eq.s32.totalorder %s15, 0
    %p63 = por %p61, %p62
    %s65 = sadd.s32 %s64, 1
    %p68 = scmp.eq.s32.totalorder %s9, 1
    %p69 = scmp.ne.s32.totalorder %s64, %s66
    %p70 = scmp.eq.s32.totalorder %s9, 0
    %p71 = por %p69, %p70
    %p72 = scmp.ne.s32.totalorder %s64, %s66
    %p73 = scmp.eq.s32.totalorder %s14, 1
    %p74 = por %p72, %p73
    %p75 = scmp.ne.s32.totalorder %s66, %s67
    %p76 = scmp.eq.s32.totalorder %s14, 0
    %p77 = por %p75, %p76
    %p78 = scmp.ne.s32.totalorder %s66, %s67
    %p79 = scmp.eq.s32.totalorder %s15, 1
    %p80 = por %p78, %p79
    %p82 = scmp.ne.s32.totalorder %s67, %s81
    %p83 = scmp.eq.s32.totalorder %s15, 0
    %p84 = por %p82, %p83
    %s85 = ssub.s32 %s9, %s16
    %p86 = scmp.eq.s32.totalorder %s85, 0
    %s88 = sadd.s32 %s87, 1
    %s89 = scalar_select %p86, %s87, %s88
    %p92 = pneg %p86
    %p93 = scmp.eq.s32.totalorder %s9, 1
    %p94 = por %p92, %p93
    %p95 = scmp.ne.s32.totalorder %s87, %s90
    %p96 = scmp.eq.s32.totalorder %s9, 0
    %p97 = por %p95, %p96
    %p98 = scmp.ne.s32.totalorder %s87, %s90
    %p99 = scmp.eq.s32.totalorder %s14, 1
    %p100 = por %p98, %p99
    %p101 = scmp.ne.s32.totalorder %s90, %s91
    %p102 = scmp.eq.s32.totalorder %s14, 0
    %p103 = por %p101, %p102
    %p104 = scmp.ne.s32.totalorder %s90, %s91
    %p105 = scmp.eq.s32.totalorder %s15, 1
    %p106 = por %p104, %p105
    %p108 = scmp.ne.s32.totalorder %s91, %s107
    %p109 = scmp.eq.s32.totalorder %s15, 0
    %p110 = por %p108, %p109
    %p111 = scmp.le.s32.totalorder 1, %s9
    %p112 = scmp.lt.s32.totalorder %s9, 3
    %p113 = pnand %p111, %p112
    %p114 = pneg %p113
    // Predicated region
    $region9: #{se_layer.1} parent=5 // pred_check
      _
    $region10: #{se_layer.1} parent=5 // pred_check_branch
      %116 = sbr.rel (%p113) target = $region12
    $region11: #{se_layer.1} parent=5 // pred_region
      %s117 = ssub.s32 %s9, 1
      // Predicated region
      $region13: #{se_layer.1} parent=11 // pred_check
        %p118 = pneg %p56
      $region14: #{se_layer.1} parent=11 // pred_check_branch
        %120 = sbr.rel (%p118) target = $region16
      $region15: #{se_layer.1} parent=11 // pred_region
        _
      $region16: #{se_layer.1} parent=11 // pred_fallthru
        _
      // Predicated region
      $region17: #{se_layer.1} parent=11 // pred_check
        %p121 = pneg %p77
      $region18: #{se_layer.1} parent=11 // pred_check_branch
        %123 = sbr.rel (%p121) target = $region20
      $region19: #{se_layer.1} parent=11 // pred_region
        _
      $region20: #{se_layer.1} parent=11 // pred_fallthru
        _
    $region12: #{se_layer.1} parent=5 // pred_fallthru
      _
    %p124 = scmp.lt.s32.totalorder %s9, 2
    // Predicated region
    $region21: #{se_layer.1} parent=5 // pred_check
      %p125 = pneg %p124
    $region22: #{se_layer.1} parent=5 // pred_check_branch
      %127 = sbr.rel (%p125) target = $region24
    $region23: #{se_layer.1} parent=5 // pred_region
      // Predicated region
      $region25: #{se_layer.1} parent=23 // pred_check
        %p128 = pneg %p29
      $region26: #{se_layer.1} parent=23 // pred_check_branch
        %130 = sbr.rel (%p128) target = $region28
      $region27: #{se_layer.1} parent=23 // pred_region
        %s131 = smul.u32 8, %s9
        %p132 = scmp.lt.s32.totalorder %s131, 15
        %s133 = scalar_select %p132, %s131, 15
        %s134 = smul.addr %s133, 8
        %s135 = scalar_lea.vmem %s0, %s134
        %s136 = smul.u32 8, %s9
      $region28: #{se_layer.1} parent=23 // pred_fallthru
        _
    $region24: #{se_layer.1} parent=5 // pred_fallthru
      _
    %p137 = scmp.le.s32.totalorder 1, %s9
    %p138 = scmp.lt.s32.totalorder %s9, 3
    %p139 = pnand %p137, %p138
    %p140 = pneg %p139
    // Predicated region
    $region29: #{se_layer.1} parent=5 // pred_check
      _
    $region30: #{se_layer.1} parent=5 // pred_check_branch
      %142 = sbr.rel (%p139) target = $region32
    $region31: #{se_layer.1} parent=5 // pred_region
      %s143 = ssub.s32 %s9, 1
      %s144 = smul.u32 8, %s14
      %p145 = scmp.lt.s32.totalorder %s144, 15
      %s146 = scalar_select %p145, %s144, 15
      %s147 = smul.addr %s146, 8
      %s148 = scalar_lea.vmem %s0, %s147
      %p149 = pneg %p35
      %p150 = pneg %p32
      %p151 = pneg %p56
      %p152 = pneg %p53
      %p153 = pneg %p77
      %p154 = pneg %p74
      %p155 = pneg %p103
      %p156 = pneg %p100
      %s157 = smul.u32 8, %s14
      %p158 = scmp.lt.s32.totalorder %s157, 15
      %s159 = scalar_select %p158, %s157, 15
      %s160 = smul.addr %s159, 8
      %s161 = scalar_lea.vmem %s3, %s160
      %s162 = smul.u32 8, %s14
      %p163 = scmp.lt.s32.totalorder %s162, 15
      %s164 = scalar_select %p163, %s162, 15
      %s165 = smul.addr %s164, 8
      %s166 = scalar_lea.vmem %s0, %s165
      %s167 = smul.u32 8, %s14
      %s168 = smul.u32 8, %s14
      %p169 = scmp.lt.s32.totalorder %s168, 15
      %s170 = scalar_select %p169, %s168, 15
      %s171 = smul.addr %s170, 8
      %s172 = scalar_lea.vmem %s3, %s171
      %s173 = smul.u32 8, %s14
      %v175 = vld [vmem:[%s166] sm:$0xff]
      %v176 = vld [vmem:[%s166 + $0x8] sm:$0xff]
      %v177 = vld [vmem:[%s166 + $0x10] sm:$0xff]
      %v178 = vld [vmem:[%s166 + $0x18] sm:$0xff]
      %v179 = vld [vmem:[%s166 + $0x20] sm:$0xff]
      %v180 = vld [vmem:[%s166 + $0x28] sm:$0xff]
      %v181 = vld [vmem:[%s166 + $0x30] sm:$0xff]
      %v182 = vld [vmem:[%s166 + $0x38] sm:$0xff]
      %v183 = vpack.c.bf16 %v176, %v175
      %v184 = vpack.c.bf16 %v178, %v177
      %v185 = vpack.c.bf16 %v180, %v179
      %v186 = vpack.c.bf16 %v182, %v181
      %v187 = vld [vmem:[%s1] sm:$0xf]
      %188 = vmatprep.subr.bf16.mxu0 0
      %189 = vmatpush1.bf16.xpose.msra.mxu0 0
      %190 = vmatprep.subr.bf16.mxu0 0
      %191 = vmatpush1.bf16.xpose.msra.mxu0 0
      %192 = vmatprep.subr.bf16.mxu0 0
      %193 = vmatpush1.bf16.xpose.msra.mxu0 0
      %194 = vmatprep.subr.bf16.mxu0 0
      %195 = vmatpush1.bf16.xpose.msra.mxu0 0
      %196 = vmatprep.subr.bf16.mxu0 0
      %197 = vmatpush1.bf16.xpose.msra.mxu0 0
      %198 = vmatprep.subr.bf16.mxu0 0
      %199 = vmatpush1.bf16.xpose.msra.mxu0 0
      %200 = vmatprep.subr.bf16.mxu0 0
      %201 = vmatpush1.bf16.xpose.msra.mxu0 0
      %202 = vmatprep.subr.bf16.mxu0 0
      %203 = vmatpush1.bf16.xpose.msra.mxu0 %v187
      %204 = vmatprep.subr.bf16.mxu0 0
      %205 = vmatpush2.bf16.xpose.msra.mxu0 0
      %206 = vmatprep.subr.bf16.mxu0 0
      %207 = vmatpush2.bf16.xpose.msra.mxu0 0
      %208 = vmatprep.subr.bf16.mxu0 0
      %209 = vmatpush2.bf16.xpose.msra.mxu0 0
      %210 = vmatprep.subr.bf16.mxu0 0
      %211 = vmatpush2.bf16.xpose.msra.mxu0 0
      %212 = vmatprep.subr.bf16.mxu0 0
      %213 = vmatpush2.bf16.xpose.msra.mxu0 0
      %214 = vmatprep.subr.bf16.mxu0 0
      %215 = vmatpush2.bf16.xpose.msra.mxu0 0
      %216 = vmatprep.subr.bf16.mxu0 0
      %217 = vmatpush2.bf16.xpose.msra.mxu0 0
      %218 = vmatprep.subr.bf16.mxu0 0
      %219 = vmatpush2.bf16.xpose.msra.mxu0 0
      %220 = vmatprep.mubr.bf16.mxu0 0
      %221 = vmatmul.mubr.bf16.gmra.mxu0 %v183
      %v222 = vpop.f32.mrf.mxu0
      %v223 = vadd.f32 0.0, %v222
      %v224 = vpop.f32.mrf.mxu0
      %v225 = vpop.f32.mrf.mxu0
      %v226 = vadd.f32 0.0, %v225
      %v227 = vpop.f32.mrf.mxu0
      %228 = vmatprep.mubr.bf16.mxu0 0
      %229 = vmatmul.mubr.bf16.gmra.mxu0 %v184
      %v230 = vpop.f32.mrf.mxu0
      %v231 = vadd.f32 0.0, %v230
      %v232 = vpop.f32.mrf.mxu0
      %v233 = vpop.f32.mrf.mxu0
      %v234 = vadd.f32 0.0, %v233
      %v235 = vpop.f32.mrf.mxu0
      %236 = vmatprep.mubr.bf16.mxu0 0
      %237 = vmatmul.mubr.bf16.gmra.mxu0 %v185
      %v238 = vpop.f32.mrf.mxu0
      %v239 = vadd.f32 0.0, %v238
      %v240 = vpop.f32.mrf.mxu0
      %v241 = vpop.f32.mrf.mxu0
      %v242 = vadd.f32 0.0, %v241
      %v243 = vpop.f32.mrf.mxu0
      %244 = vmatprep.mubr.bf16.mxu0 0
      %245 = vmatmul.mubr.bf16.gmra.mxu0 %v186
      %v246 = vpop.f32.mrf.mxu0
      %v247 = vadd.f32 0.0, %v246
      %v248 = vpop.f32.mrf.mxu0
      %v249 = vpop.f32.mrf.mxu0
      %v250 = vadd.f32 0.0, %v249
      %v251 = vpop.f32.mrf.mxu0
      %252 = vdwg.mxu0
      %v253 = vmax.f32 %v223, 0.0
      %v254 = vmax.f32 %v226, 0.0
      %v255 = vmax.f32 %v231, 0.0
      %v256 = vmax.f32 %v234, 0.0
      %v257 = vmax.f32 %v239, 0.0
      %v258 = vmax.f32 %v242, 0.0
      %v259 = vmax.f32 %v247, 0.0
      %v260 = vmax.f32 %v250, 0.0
      %v261 = vld [vmem:[%s2] sm:$0xff]
      %263 = vset.pattern.permute.xlu0 0
      %264 = vperm.xlu0 %263, %v253
      %v265 = vpop.permute.xlu0 %264
      %268 = vset.pattern.permute.xlu0 0
      %269 = vperm.xlu0 %268, %v254
      %v270 = vpop.permute.xlu0 %269
      %273 = vset.pattern.permute.xlu0 0
      %274 = vperm.xlu0 %273, %v255
      %v275 = vpop.permute.xlu0 %274
      %278 = vset.pattern.permute.xlu0 0
      %279 = vperm.xlu0 %278, %v256
      %v280 = vpop.permute.xlu0 %279
      %283 = vset.pattern.permute.xlu0 0
      %284 = vperm.xlu0 %283, %v257
      %v285 = vpop.permute.xlu0 %284
      %288 = vset.pattern.permute.xlu0 0
      %289 = vperm.xlu0 %288, %v258
      %v290 = vpop.permute.xlu0 %289
      %293 = vset.pattern.permute.xlu0 0
      %294 = vperm.xlu0 %293, %v259
      %v295 = vpop.permute.xlu0 %294
      %298 = vset.pattern.permute.xlu0 0
      %299 = vperm.xlu0 %298, %v260
      %v300 = vpop.permute.xlu0 %299
      %v302 = vlaneseq
      %v303 = vshrl.u32 %v302, 7
      %v304 = vsub.s32 0, %v303
      %v305 = vrot.slane %v261, %v304
      %v306 = vmul.f32 %v265, %v305
      %v307 = vmul.f32 %v270, %v305
      %v308 = vmul.f32 %v275, %v305
      %v309 = vmul.f32 %v280, %v305
      %v310 = vmul.f32 %v285, %v305
      %v311 = vmul.f32 %v290, %v305
      %v312 = vmul.f32 %v295, %v305
      %v313 = vmul.f32 %v300, %v305
      %314 = vset.pattern.permute.xlu0 1
      %315 = vperm.xlu0 %314, %v253
      %v316 = vpop.permute.xlu0 %315
      %318 = vset.pattern.permute.xlu0 1
      %319 = vperm.xlu0 %318, %v254
      %v320 = vpop.permute.xlu0 %319
      %322 = vset.pattern.permute.xlu0 1
      %323 = vperm.xlu0 %322, %v255
      %v324 = vpop.permute.xlu0 %323
      %326 = vset.pattern.permute.xlu0 1
      %327 = vperm.xlu0 %326, %v256
      %v328 = vpop.permute.xlu0 %327
      %330 = vset.pattern.permute.xlu0 1
      %331 = vperm.xlu0 %330, %v257
      %v332 = vpop.permute.xlu0 %331
      %334 = vset.pattern.permute.xlu0 1
      %335 = vperm.xlu0 %334, %v258
      %v336 = vpop.permute.xlu0 %335
      %338 = vset.pattern.permute.xlu0 1
      %339 = vperm.xlu0 %338, %v259
      %v340 = vpop.permute.xlu0 %339
      %342 = vset.pattern.permute.xlu0 1
      %343 = vperm.xlu0 %342, %v260
      %v344 = vpop.permute.xlu0 %343
      %v346 = vlaneseq
      %v347 = vshrl.u32 %v346, 7
      %v348 = vsub.s32 1, %v347
      %v349 = vrot.slane %v261, %v348
      %v350 = vmul.f32 %v316, %v349
      %v351 = vmul.f32 %v320, %v349
      %v352 = vmul.f32 %v324, %v349
      %v353 = vmul.f32 %v328, %v349
      %v354 = vmul.f32 %v332, %v349
      %v355 = vmul.f32 %v336, %v349
      %v356 = vmul.f32 %v340, %v349
      %v357 = vmul.f32 %v344, %v349
      %v358 = vadd.f32 %v306, %v350
      %v359 = vadd.f32 %v307, %v351
      %v360 = vadd.f32 %v308, %v352
      %v361 = vadd.f32 %v309, %v353
      %v362 = vadd.f32 %v310, %v354
      %v363 = vadd.f32 %v311, %v355
      %v364 = vadd.f32 %v312, %v356
      %v365 = vadd.f32 %v313, %v357
      %366 = vset.pattern.permute.xlu0 2
      %367 = vperm.xlu0 %366, %v253
      %v368 = vpop.permute.xlu0 %367
      %370 = vset.pattern.permute.xlu0 2
      %371 = vperm.xlu0 %370, %v254
      %v372 = vpop.permute.xlu0 %371
      %374 = vset.pattern.permute.xlu0 2
      %375 = vperm.xlu0 %374, %v255
      %v376 = vpop.permute.xlu0 %375
      %378 = vset.pattern.permute.xlu0 2
      %379 = vperm.xlu0 %378, %v256
      %v380 = vpop.permute.xlu0 %379
      %382 = vset.pattern.permute.xlu0 2
      %383 = vperm.xlu0 %382, %v257
      %v384 = vpop.permute.xlu0 %383
      %386 = vset.pattern.permute.xlu0 2
      %387 = vperm.xlu0 %386, %v258
      %v388 = vpop.permute.xlu0 %387
      %390 = vset.pattern.permute.xlu0 2
      %391 = vperm.xlu0 %390, %v259
      %v392 = vpop.permute.xlu0 %391
      %394 = vset.pattern.permute.xlu0 2
      %395 = vperm.xlu0 %394, %v260
      %v396 = vpop.permute.xlu0 %395
      %v398 = vlaneseq
      %v399 = vshrl.u32 %v398, 7
      %v400 = vsub.s32 2, %v399
      %v401 = vrot.slane %v261, %v400
      %v402 = vmul.f32 %v368, %v401
      %v403 = vmul.f32 %v372, %v401
      %v404 = vmul.f32 %v376, %v401
      %v405 = vmul.f32 %v380, %v401
      %v406 = vmul.f32 %v384, %v401
      %v407 = vmul.f32 %v388, %v401
      %v408 = vmul.f32 %v392, %v401
      %v409 = vmul.f32 %v396, %v401
      %v410 = vadd.f32 %v358, %v402
      %v411 = vadd.f32 %v359, %v403
      %v412 = vadd.f32 %v360, %v404
      %v413 = vadd.f32 %v361, %v405
      %v414 = vadd.f32 %v362, %v406
      %v415 = vadd.f32 %v363, %v407
      %v416 = vadd.f32 %v364, %v408
      %v417 = vadd.f32 %v365, %v409
      %418 = vset.pattern.permute.xlu0 3
      %419 = vperm.xlu0 %418, %v253
      %v420 = vpop.permute.xlu0 %419
      %422 = vset.pattern.permute.xlu0 3
      %423 = vperm.xlu0 %422, %v254
      %v424 = vpop.permute.xlu0 %423
      %426 = vset.pattern.permute.xlu0 3
      %427 = vperm.xlu0 %426, %v255
      %v428 = vpop.permute.xlu0 %427
      %430 = vset.pattern.permute.xlu0 3
      %431 = vperm.xlu0 %430, %v256
      %v432 = vpop.permute.xlu0 %431
      %434 = vset.pattern.permute.xlu0 3
      %435 = vperm.xlu0 %434, %v257
      %v436 = vpop.permute.xlu0 %435
      %438 = vset.pattern.permute.xlu0 3
      %439 = vperm.xlu0 %438, %v258
      %v440 = vpop.permute.xlu0 %439
      %442 = vset.pattern.permute.xlu0 3
      %443 = vperm.xlu0 %442, %v259
      %v444 = vpop.permute.xlu0 %443
      %446 = vset.pattern.permute.xlu0 3
      %447 = vperm.xlu0 %446, %v260
      %v448 = vpop.permute.xlu0 %447
      %v450 = vlaneseq
      %v451 = vshrl.u32 %v450, 7
      %v452 = vsub.s32 3, %v451
      %v453 = vrot.slane %v261, %v452
      %v454 = vmul.f32 %v420, %v453
      %v455 = vmul.f32 %v424, %v453
      %v456 = vmul.f32 %v428, %v453
      %v457 = vmul.f32 %v432, %v453
      %v458 = vmul.f32 %v436, %v453
      %v459 = vmul.f32 %v440, %v453
      %v460 = vmul.f32 %v444, %v453
      %v461 = vmul.f32 %v448, %v453
      %v462 = vadd.f32 %v410, %v454
      %v463 = vadd.f32 %v411, %v455
      %v464 = vadd.f32 %v412, %v456
      %v465 = vadd.f32 %v413, %v457
      %v466 = vadd.f32 %v414, %v458
      %v467 = vadd.f32 %v415, %v459
      %v468 = vadd.f32 %v416, %v460
      %v469 = vadd.f32 %v417, %v461
      %470 = vset.pattern.permute.xlu0 4
      %471 = vperm.xlu0 %470, %v253
      %v472 = vpop.permute.xlu0 %471
      %474 = vset.pattern.permute.xlu0 4
      %475 = vperm.xlu0 %474, %v254
      %v476 = vpop.permute.xlu0 %475
      %478 = vset.pattern.permute.xlu0 4
      %479 = vperm.xlu0 %478, %v255
      %v480 = vpop.permute.xlu0 %479
      %482 = vset.pattern.permute.xlu0 4
      %483 = vperm.xlu0 %482, %v256
      %v484 = vpop.permute.xlu0 %483
      %486 = vset.pattern.permute.xlu0 4
      %487 = vperm.xlu0 %486, %v257
      %v488 = vpop.permute.xlu0 %487
      %490 = vset.pattern.permute.xlu0 4
      %491 = vperm.xlu0 %490, %v258
      %v492 = vpop.permute.xlu0 %491
      %494 = vset.pattern.permute.xlu0 4
      %495 = vperm.xlu0 %494, %v259
      %v496 = vpop.permute.xlu0 %495
      %498 = vset.pattern.permute.xlu0 4
      %499 = vperm.xlu0 %498, %v260
      %v500 = vpop.permute.xlu0 %499
      %v502 = vlaneseq
      %v503 = vshrl.u32 %v502, 7
      %v504 = vsub.s32 4, %v503
      %v505 = vrot.slane %v261, %v504
      %v506 = vmul.f32 %v472, %v505
      %v507 = vmul.f32 %v476, %v505
      %v508 = vmul.f32 %v480, %v505
      %v509 = vmul.f32 %v484, %v505
      %v510 = vmul.f32 %v488, %v505
      %v511 = vmul.f32 %v492, %v505
      %v512 = vmul.f32 %v496, %v505
      %v513 = vmul.f32 %v500, %v505
      %v514 = vadd.f32 %v462, %v506
      %v515 = vadd.f32 %v463, %v507
      %v516 = vadd.f32 %v464, %v508
      %v517 = vadd.f32 %v465, %v509
      %v518 = vadd.f32 %v466, %v510
      %v519 = vadd.f32 %v467, %v511
      %v520 = vadd.f32 %v468, %v512
      %v521 = vadd.f32 %v469, %v513
      %522 = vset.pattern.permute.xlu0 5
      %523 = vperm.xlu0 %522, %v253
      %v524 = vpop.permute.xlu0 %523
      %526 = vset.pattern.permute.xlu0 5
      %527 = vperm.xlu0 %526, %v254
      %v528 = vpop.permute.xlu0 %527
      %530 = vset.pattern.permute.xlu0 5
      %531 = vperm.xlu0 %530, %v255
      %v532 = vpop.permute.xlu0 %531
      %534 = vset.pattern.permute.xlu0 5
      %535 = vperm.xlu0 %534, %v256
      %v536 = vpop.permute.xlu0 %535
      %538 = vset.pattern.permute.xlu0 5
      %539 = vperm.xlu0 %538, %v257
      %v540 = vpop.permute.xlu0 %539
      %542 = vset.pattern.permute.xlu0 5
      %543 = vperm.xlu0 %542, %v258
      %v544 = vpop.permute.xlu0 %543
      %546 = vset.pattern.permute.xlu0 5
      %547 = vperm.xlu0 %546, %v259
      %v548 = vpop.permute.xlu0 %547
      %550 = vset.pattern.permute.xlu0 5
      %551 = vperm.xlu0 %550, %v260
      %v552 = vpop.permute.xlu0 %551
      %v554 = vlaneseq
      %v555 = vshrl.u32 %v554, 7
      %v556 = vsub.s32 5, %v555
      %v557 = vrot.slane %v261, %v556
      %v558 = vmul.f32 %v524, %v557
      %v559 = vmul.f32 %v528, %v557
      %v560 = vmul.f32 %v532, %v557
      %v561 = vmul.f32 %v536, %v557
      %v562 = vmul.f32 %v540, %v557
      %v563 = vmul.f32 %v544, %v557
      %v564 = vmul.f32 %v548, %v557
      %v565 = vmul.f32 %v552, %v557
      %v566 = vadd.f32 %v514, %v558
      %v567 = vadd.f32 %v515, %v559
      %v568 = vadd.f32 %v516, %v560
      %v569 = vadd.f32 %v517, %v561
      %v570 = vadd.f32 %v518, %v562
      %v571 = vadd.f32 %v519, %v563
      %v572 = vadd.f32 %v520, %v564
      %v573 = vadd.f32 %v521, %v565
      %574 = vset.pattern.permute.xlu0 6
      %575 = vperm.xlu0 %574, %v253
      %v576 = vpop.permute.xlu0 %575
      %578 = vset.pattern.permute.xlu0 6
      %579 = vperm.xlu0 %578, %v254
      %v580 = vpop.permute.xlu0 %579
      %582 = vset.pattern.permute.xlu0 6
      %583 = vperm.xlu0 %582, %v255
      %v584 = vpop.permute.xlu0 %583
      %586 = vset.pattern.permute.xlu0 6
      %587 = vperm.xlu0 %586, %v256
      %v588 = vpop.permute.xlu0 %587
      %590 = vset.pattern.permute.xlu0 6
      %591 = vperm.xlu0 %590, %v257
      %v592 = vpop.permute.xlu0 %591
      %594 = vset.pattern.permute.xlu0 6
      %595 = vperm.xlu0 %594, %v258
      %v596 = vpop.permute.xlu0 %595
      %598 = vset.pattern.permute.xlu0 6
      %599 = vperm.xlu0 %598, %v259
      %v600 = vpop.permute.xlu0 %599
      %602 = vset.pattern.permute.xlu0 6
      %603 = vperm.xlu0 %602, %v260
      %v604 = vpop.permute.xlu0 %603
      %v606 = vlaneseq
      %v607 = vshrl.u32 %v606, 7
      %v608 = vsub.s32 6, %v607
      %v609 = vrot.slane %v261, %v608
      %v610 = vmul.f32 %v576, %v609
      %v611 = vmul.f32 %v580, %v609
      %v612 = vmul.f32 %v584, %v609
      %v613 = vmul.f32 %v588, %v609
      %v614 = vmul.f32 %v592, %v609
      %v615 = vmul.f32 %v596, %v609
      %v616 = vmul.f32 %v600, %v609
      %v617 = vmul.f32 %v604, %v609
      %v618 = vadd.f32 %v566, %v610
      %v619 = vadd.f32 %v567, %v611
      %v620 = vadd.f32 %v568, %v612
      %v621 = vadd.f32 %v569, %v613
      %v622 = vadd.f32 %v570, %v614
      %v623 = vadd.f32 %v571, %v615
      %v624 = vadd.f32 %v572, %v616
      %v625 = vadd.f32 %v573, %v617
      %626 = vset.pattern.permute.xlu0 7
      %627 = vperm.xlu0 %626, %v253
      %v628 = vpop.permute.xlu0 %627
      %630 = vset.pattern.permute.xlu0 7
      %631 = vperm.xlu0 %630, %v254
      %v632 = vpop.permute.xlu0 %631
      %634 = vset.pattern.permute.xlu0 7
      %635 = vperm.xlu0 %634, %v255
      %v636 = vpop.permute.xlu0 %635
      %638 = vset.pattern.permute.xlu0 7
      %639 = vperm.xlu0 %638, %v256
      %v640 = vpop.permute.xlu0 %639
      %642 = vset.pattern.permute.xlu0 7
      %643 = vperm.xlu0 %642, %v257
      %v644 = vpop.permute.xlu0 %643
      %646 = vset.pattern.permute.xlu0 7
      %647 = vperm.xlu0 %646, %v258
      %v648 = vpop.permute.xlu0 %647
      %650 = vset.pattern.permute.xlu0 7
      %651 = vperm.xlu0 %650, %v259
      %v652 = vpop.permute.xlu0 %651
      %654 = vset.pattern.permute.xlu0 7
      %655 = vperm.xlu0 %654, %v260
      %v656 = vpop.permute.xlu0 %655
      %v658 = vlaneseq
      %v659 = vshrl.u32 %v658, 7
      %v660 = vsub.s32 7, %v659
      %v661 = vrot.slane %v261, %v660
      %v662 = vmul.f32 %v628, %v661
      %v663 = vmul.f32 %v632, %v661
      %v664 = vmul.f32 %v636, %v661
      %v665 = vmul.f32 %v640, %v661
      %v666 = vmul.f32 %v644, %v661
      %v667 = vmul.f32 %v648, %v661
      %v668 = vmul.f32 %v652, %v661
      %v669 = vmul.f32 %v656, %v661
      %v670 = vadd.f32 %v618, %v662
      %v671 = vadd.f32 %v619, %v663
      %v672 = vadd.f32 %v620, %v664
      %v673 = vadd.f32 %v621, %v665
      %v674 = vadd.f32 %v622, %v666
      %v675 = vadd.f32 %v623, %v667
      %v676 = vadd.f32 %v624, %v668
      %v677 = vadd.f32 %v625, %v669
      %v678 = vsub.f32 0.0, %v670
      %v679 = vsub.f32 0.0, %v671
      %v680 = vsub.f32 0.0, %v672
      %v681 = vsub.f32 0.0, %v673
      %v682 = vsub.f32 0.0, %v674
      %v683 = vsub.f32 0.0, %v675
      %v684 = vsub.f32 0.0, %v676
      %v685 = vsub.f32 0.0, %v677
      %v686 = vmul.f32 %v678, 1.442695
      %v687 = vpow.pop %v686
      %v688 = vmul.f32 %v679, 1.442695
      %v689 = vpow.pop %v688
      %v690 = vmul.f32 %v680, 1.442695
      %v691 = vpow.pop %v690
      %v692 = vmul.f32 %v681, 1.442695
      %v693 = vpow.pop %v692
      %v694 = vmul.f32 %v682, 1.442695
      %v695 = vpow.pop %v694
      %v696 = vmul.f32 %v683, 1.442695
      %v697 = vpow.pop %v696
      %v698 = vmul.f32 %v684, 1.442695
      %v699 = vpow.pop %v698
      %v700 = vmul.f32 %v685, 1.442695
      %v701 = vpow.pop %v700
      %v702 = vadd.f32 %v687, 1.0
      %v703 = vadd.f32 %v689, 1.0
      %v704 = vadd.f32 %v691, 1.0
      %v705 = vadd.f32 %v693, 1.0
      %v706 = vadd.f32 %v695, 1.0
      %v707 = vadd.f32 %v697, 1.0
      %v708 = vadd.f32 %v699, 1.0
      %v709 = vadd.f32 %v701, 1.0
      %v710 = vrcp.pop %v702
      %v711 = vrcp.pop %v703
      %v712 = vrcp.pop %v704
      %v713 = vrcp.pop %v705
      %v714 = vrcp.pop %v706
      %v715 = vrcp.pop %v707
      %v716 = vrcp.pop %v708
      %v717 = vrcp.pop %v709
      %v718 = vmul.f32 %v175, %v710
      %v719 = vmul.f32 %v176, %v711
      %v720 = vmul.f32 %v177, %v712
      %v721 = vmul.f32 %v178, %v713
      %v722 = vmul.f32 %v179, %v714
      %v723 = vmul.f32 %v180, %v715
      %v724 = vmul.f32 %v181, %v716
      %v725 = vmul.f32 %v182, %v717
      %726 = vst [vmem:[%s172] sm:$0xff] %v718
      %727 = vst [vmem:[%s172 + $0x8] sm:$0xff] %v719
      %728 = vst [vmem:[%s172 + $0x10] sm:$0xff] %v720
      %729 = vst [vmem:[%s172 + $0x18] sm:$0xff] %v721
      %730 = vst [vmem:[%s172 + $0x20] sm:$0xff] %v722
      %731 = vst [vmem:[%s172 + $0x28] sm:$0xff] %v723
      %732 = vst [vmem:[%s172 + $0x30] sm:$0xff] %v724
      %733 = vst [vmem:[%s172 + $0x38] sm:$0xff] %v725
      %s734 = smul.u32 8, %s14
      %p735 = scmp.lt.s32.totalorder %s734, 15
      %s736 = scalar_select %p735, %s734, 15
      %s737 = smul.addr %s736, 8
      %s738 = scalar_lea.vmem %s3, %s737
      // Predicated region
      $region33: #{se_layer.1} parent=31 // pred_check
        %p739 = pneg %p100
      $region34: #{se_layer.1} parent=31 // pred_check_branch
        %741 = sbr.rel (%p739) target = $region36
      $region35: #{se_layer.1} parent=31 // pred_region
        %s742 = smul.u32 8, %s14
      $region36: #{se_layer.1} parent=31 // pred_fallthru
        _
    $region32: #{se_layer.1} parent=5 // pred_fallthru
      _
    %p743 = scmp.le.s32.totalorder 2, %s9
    // Predicated region
    $region37: #{se_layer.1} parent=5 // pred_check
      %p744 = pneg %p743
    $region38: #{se_layer.1} parent=5 // pred_check_branch
      %746 = sbr.rel (%p744) target = $region40
    $region39: #{se_layer.1} parent=5 // pred_region
      %s747 = ssub.s32 %s9, 2
      // Predicated region
      $region41: #{se_layer.1} parent=39 // pred_check
        %p748 = pneg %p106
      $region42: #{se_layer.1} parent=39 // pred_check_branch
        %750 = sbr.rel (%p748) target = $region44
      $region43: #{se_layer.1} parent=39 // pred_region
        %s751 = smul.u32 8, %s15
        %p752 = scmp.lt.s32.totalorder %s751, 15
        %s753 = scalar_select %p752, %s751, 15
        %s754 = smul.addr %s753, 8
        %s755 = scalar_lea.vmem %s3, %s754
      $region44: #{se_layer.1} parent=39 // pred_fallthru
        _
    $region40: #{se_layer.1} parent=5 // pred_fallthru
      _
  $region6: #{se_layer.1} parent=0 // loop_footer
    %s13 = sadd.s32 1, %s9
  $region7: #{se_layer.1} parent=0 // loop_footer_branch
    %8 = sbr.rel target = $region3
  $region8: #{se_layer.1} parent=0 // loop_exit
    _

</llo_original>
